<compile_context>
chip_gen: v6e
topology: v6e:2x2x1
jax: 0.10.0
libtpu: 0.0.40
codegen_flags: <defaults>
</compile_context>

<pallas_src>
import jax
import jax.numpy as jnp
from jax import lax
from jax.experimental import pallas as pl
from jax.experimental.pallas import tpu as pltpu

INPUT_SIZE = 48
HIDDEN_SIZES = [32, 16, 8]
OUTPUT_SIZE = 4
NEG_SLOPE = 0.01            # torch.nn.LeakyReLU default
MXU_DTYPE = jnp.bfloat16    # matmul-operand dtype (accumulation stays f32)

_DIMS = tuple([INPUT_SIZE] + HIDDEN_SIZES + [OUTPUT_SIZE])   # (48, 32, 16, 8, 4)
_NT = (((1,), (1,)), ((), ()))                                # contract on dim 1 of both


def _round_up(n, m):
    return ((n + m - 1) // m) * m


# ---- packed parameter layout ------------------------------------------------
# Weights (stored [out, in], i.e. PyTorch nn.Linear.weight layout) are packed
# row-wise into one bf16 buffer; row offsets are 16-aligned so every bf16
# sublane slice is aligned.  Biases are packed into one f32 column buffer
# (8-aligned offsets).
_W_OFFS = []
_off = 0
for _d in _DIMS[1:]:
    _W_OFFS.append(_off)
    _off += _round_up(_d, 16)
_W_OFFS = tuple(_W_OFFS)            # (0, 32, 48, 64)
_W_ROWS = _off                      # 80

_B_OFFS = []
_off = 0
for _d in _DIMS[1:]:
    _B_OFFS.append(_off)
    _off += _d
_B_OFFS = tuple(_B_OFFS)            # (0, 32, 48, 56)
_B_ROWS = _round_up(_off, 8)        # 64


def _leaky_relu(x):
    # max(x, a*x) == leaky_relu for 0 < a < 1; one fewer VALU op than where().
    return jnp.maximum(x, NEG_SLOPE * x)


def mlp_kernel(x_ref, w_ref, b_ref, o_ref):
    # In-kernel bf16 cast of the activations (no separate wrapper cast pass).
    x = x_ref[...].astype(MXU_DTYPE)                                  # [tile_b, 48]

    # Layer 1: h = W1 @ x^T  (batch on the lane axis), f32 accumulate.
    w1 = w_ref[_W_OFFS[0]:_W_OFFS[0] + _DIMS[1], 0:_DIMS[0]]          # [32, 48] bf16
    b1 = b_ref[_B_OFFS[0]:_B_OFFS[0] + _DIMS[1], :]                   # [32, 1]  f32
    h = lax.dot_general(w1, x, _NT, preferred_element_type=jnp.float32)
    h = _leaky_relu(h + b1)                                           # [32, tile_b]
    # TODO(synk): nn.Dropout(p=0.1) is identity here (eval-mode semantics).

    # Hidden layers 2..3: (out, in) @ (in, tile_b).
    for layer in (1, 2):
        w = w_ref[_W_OFFS[layer]:_W_OFFS[layer] + _DIMS[layer + 1], 0:_DIMS[layer]]
        b = b_ref[_B_OFFS[layer]:_B_OFFS[layer] + _DIMS[layer + 1], :]
        h = jnp.dot(w, h.astype(MXU_DTYPE), preferred_element_type=jnp.float32)
        h = _leaky_relu(h + b)

    # Final Linear(8 -> 4), no activation.
    w4 = w_ref[_W_OFFS[3]:_W_OFFS[3] + _DIMS[4], 0:_DIMS[3]]          # [4, 8]
    b4 = b_ref[_B_OFFS[3]:_B_OFFS[3] + _DIMS[4], :]                   # [4, 1]
    h = jnp.dot(w4, h.astype(MXU_DTYPE), preferred_element_type=jnp.float32) + b4

    o_ref[...] = h.astype(o_ref.dtype)                                # [4, tile_b], lane-dense


def _choose_tile_b(batch, tile_b):
    if batch <= 128:
        # Single full-array block: always a legal BlockSpec, perf irrelevant.
        return batch
    # Lane dim of the output block must be a multiple of 128 (lane-dense,
    # unmasked stores); the ragged final block is bounds-masked by Pallas.
    tile_b = max(128, _round_up(min(tile_b, batch), 128))
    # v7x megacore: prefer >= 2 grid steps so the "parallel" batch axis can be
    # sharded across both TensorCores.
    if pl.cdiv(batch, tile_b) < 2:
        half = max(128, _round_up(pl.cdiv(batch, 2), 128))
        if pl.cdiv(batch, half) >= 2:
            tile_b = half
    return tile_b


def mlp_forward(x, packed_params, *, tile_b=4096):
    """x: [..., INPUT_SIZE] float32.  packed_params from pack_params()."""
    w_packed, b_packed = packed_params
    assert x.shape[-1] == INPUT_SIZE
    lead = x.shape[:-1]
    x2 = x.reshape(-1, INPUT_SIZE)
    batch = x2.shape[0]

    tile_b = _choose_tile_b(batch, tile_b)
    grid_b = pl.cdiv(batch, tile_b)           # no jnp.pad: last block is masked

    out_t = pl.pallas_call(
        mlp_kernel,
        out_shape=jax.ShapeDtypeStruct((OUTPUT_SIZE, batch), jnp.float32),
        grid_spec=pltpu.PrefetchScalarGridSpec(
            num_scalar_prefetch=0,
            grid=(grid_b,),
            in_specs=[
                pl.BlockSpec((tile_b, INPUT_SIZE), lambda i: (i, 0)),
                # Grid-invariant full-array parameter blocks (fetched once).
                pl.BlockSpec(w_packed.shape, lambda i: (0, 0)),
                pl.BlockSpec(b_packed.shape, lambda i: (0, 0)),
            ],
            out_specs=pl.BlockSpec((OUTPUT_SIZE, tile_b), lambda i: (0, i)),
        ),
        compiler_params=pltpu.CompilerParams(
            dimension_semantics=("parallel",),
            vmem_limit_bytes=32 * 1024 * 1024),
    )(x2, w_packed, b_packed)

    # [4, B] -> [B, 4]: tiny (16 B/row) transpose so callers get the PyTorch
    # [batch, out_features] layout; callers that can consume [4, B] should.
    return out_t.T.reshape(*lead, OUTPUT_SIZE)


def init_params(key):
    """Deterministic PyTorch-style init.  W: [out, in] (nn.Linear.weight
    layout), b: [out]."""
    params = []
    for fan_in, fan_out in zip(_DIMS[:-1], _DIMS[1:]):
        key, kw, kb = jax.random.split(key, 3)
        bound = 1.0 / (fan_in ** 0.5)
        w = jax.random.uniform(kw, (fan_out, fan_in), jnp.float32, -bound, bound)
        b = jax.random.uniform(kb, (fan_out,), jnp.float32, -bound, bound)
        params.append((w, b))
    return params


def pack_params(params):
    """One-time packing of the 4 (W, b) pairs into a bf16 weight buffer and an
    f32 bias buffer (both tiny, ~10 KB total)."""
    w_packed = jnp.zeros((_W_ROWS, INPUT_SIZE), MXU_DTYPE)
    b_packed = jnp.zeros((_B_ROWS, 1), jnp.float32)
    for i, (w, b) in enumerate(params):
        out_d, in_d = _DIMS[i + 1], _DIMS[i]
        assert w.shape == (out_d, in_d), w.shape
        assert b.shape == (out_d,), b.shape
        w_packed = w_packed.at[_W_OFFS[i]:_W_OFFS[i] + out_d, :in_d].set(
            w.astype(MXU_DTYPE))
        b_packed = b_packed.at[_B_OFFS[i]:_B_OFFS[i] + out_d, 0].set(
            b.astype(jnp.float32))
    return w_packed, b_packed


def mlp_reference_bf16(x, params):
    """Reference doing the same bf16-operand / f32-accumulate math."""
    h = x
    for idx, (w, b) in enumerate(params):
        h = jnp.dot(h.astype(MXU_DTYPE), w.T.astype(MXU_DTYPE),
                    preferred_element_type=jnp.float32) + b
        if idx < len(params) - 1:
            h = jnp.maximum(h, NEG_SLOPE * h)
    return h


def mlp_reference_f32(x, params):
    h = x
    for idx, (w, b) in enumerate(params):
        h = h @ w.T + b
        if idx < len(params) - 1:
            h = jnp.maximum(h, NEG_SLOPE * h)
    return h


if __name__ == "__main__":
    key = jax.random.PRNGKey(0)
    kx, kp = jax.random.split(key)
    params = init_params(kp)
    packed = pack_params(params)

    # Small ragged batch (not a multiple of 8 or 128): single masked block.
    B = 40
    x = jax.random.normal(kx, (B, INPUT_SIZE), jnp.float32)
    out = jax.block_until_ready(mlp_forward(x, packed))
    assert out.shape == (B, OUTPUT_SIZE)

    ref_bf16 = mlp_reference_bf16(x, params)
    assert jnp.allclose(out, ref_bf16, atol=5e-3, rtol=5e-3), (
        float(jnp.max(jnp.abs(out - ref_bf16))))
    ref_f32 = mlp_reference_f32(x, params)
    assert jnp.allclose(out, ref_f32, atol=7.5e-2, rtol=5e-2), (
        float(jnp.max(jnp.abs(out - ref_f32))))

    # Larger ragged batch exercising a multi-step grid (3 steps, masked tail).
    B2 = 300
    x2 = jax.random.normal(kx, (B2, INPUT_SIZE), jnp.float32)
    out2 = jax.block_until_ready(mlp_forward(x2, packed, tile_b=128))
    assert out2.shape == (B2, OUTPUT_SIZE)
    ref2 = mlp_reference_bf16(x2, params)
    assert jnp.allclose(out2, ref2, atol=5e-3, rtol=5e-3), (
        float(jnp.max(jnp.abs(out2 - ref2))))

    print("KERNEL_OK")
</pallas_src>

<mosaic_0001>
module attributes {stable_mosaic.version = 11 : i64} {
  func.func @mlp_kernel(%arg0: i32, %arg1: memref<40x48xf32, #tpu.memory_space<vmem>>, %arg2: memref<80x48xbf16, #tpu.memory_space<vmem>>, %arg3: memref<64x1xf32, #tpu.memory_space<vmem>>, %arg4: memref<4x40xf32, #tpu.memory_space<vmem>>) attributes {dimension_semantics = [#tpu.dimension_semantics<parallel>], iteration_bounds = array<i64: 1>, scalar_prefetch = 0 : i64, scratch_operands = 0 : i64, tpu.core_type = #tpu.core_type<tc>, window_params = [{transform_indices = @transform_0, window_bounds = array<i64: 40, 48>}, {pipeline_mode = #tpu.pipeline_mode<synchronous>, transform_indices = @transform_1, window_bounds = array<i64: 80, 48>}, {pipeline_mode = #tpu.pipeline_mode<synchronous>, transform_indices = @transform_2, window_bounds = array<i64: 64, 1>}, {transform_indices = @transform_3, window_bounds = array<i64: 4, 40>}]} {
    %c0 = arith.constant 0 : index
    %c0_0 = arith.constant 0 : index
    %0 = vector.load %arg1[%c0, %c0_0] : memref<40x48xf32, #tpu.memory_space<vmem>>, vector<40x48xf32>
    %1 = arith.truncf %0 : vector<40x48xf32> to vector<40x48xbf16>
    %c0_1 = arith.constant 0 : index
    %c0_2 = arith.constant 0 : index
    %2 = vector.load %arg2[%c0_1, %c0_2] : memref<80x48xbf16, #tpu.memory_space<vmem>>, vector<32x48xbf16>
    %c0_3 = arith.constant 0 : index
    %c0_4 = arith.constant 0 : index
    %3 = vector.load %arg3[%c0_3, %c0_4] : memref<64x1xf32, #tpu.memory_space<vmem>>, vector<32x1xf32>
    %cst = arith.constant dense<0.000000e+00> : vector<32x40xf32>
    %4 = tpu.matmul %2, %1, %cst {dimension_numbers = #tpu.dot_dimension_numbers<[1], [1], [0], [0], [0, 0, 1, 0], [], []>} : vector<32x48xbf16>, vector<40x48xbf16>, vector<32x40xf32> -> vector<32x40xf32>
    %5 = vector.broadcast %3 : vector<32x1xf32> to vector<32x40xf32>
    %6 = arith.addf %4, %5 : vector<32x40xf32>
    %cst_5 = arith.constant 0.00999999977 : f32
    %7 = vector.broadcast %cst_5 : f32 to vector<32x40xf32>
    %8 = arith.mulf %7, %6 : vector<32x40xf32>
    %9 = arith.maximumf %6, %8 : vector<32x40xf32>
    %c32 = arith.constant 32 : index
    %c0_6 = arith.constant 0 : index
    %10 = vector.load %arg2[%c32, %c0_6] : memref<80x48xbf16, #tpu.memory_space<vmem>>, vector<16x32xbf16>
    %c32_7 = arith.constant 32 : index
    %c0_8 = arith.constant 0 : index
    %11 = vector.load %arg3[%c32_7, %c0_8] : memref<64x1xf32, #tpu.memory_space<vmem>>, vector<16x1xf32>
    %12 = arith.truncf %9 : vector<32x40xf32> to vector<32x40xbf16>
    %cst_9 = arith.constant dense<0.000000e+00> : vector<16x40xf32>
    %13 = tpu.matmul %10, %12, %cst_9 {dimension_numbers = #tpu.dot_dimension_numbers<[1], [0], [0], [1], [0, 0, 1, 1], [], []>} : vector<16x32xbf16>, vector<32x40xbf16>, vector<16x40xf32> -> vector<16x40xf32>
    %14 = vector.broadcast %11 : vector<16x1xf32> to vector<16x40xf32>
    %15 = arith.addf %13, %14 : vector<16x40xf32>
    %cst_10 = arith.constant 0.00999999977 : f32
    %16 = vector.broadcast %cst_10 : f32 to vector<16x40xf32>
    %17 = arith.mulf %16, %15 : vector<16x40xf32>
    %18 = arith.maximumf %15, %17 : vector<16x40xf32>
    %c48 = arith.constant 48 : index
    %c0_11 = arith.constant 0 : index
    %19 = vector.load %arg2[%c48, %c0_11] : memref<80x48xbf16, #tpu.memory_space<vmem>>, vector<8x16xbf16>
    %c48_12 = arith.constant 48 : index
    %c0_13 = arith.constant 0 : index
    %20 = vector.load %arg3[%c48_12, %c0_13] : memref<64x1xf32, #tpu.memory_space<vmem>>, vector<8x1xf32>
    %21 = arith.truncf %18 : vector<16x40xf32> to vector<16x40xbf16>
    %cst_14 = arith.constant dense<0.000000e+00> : vector<8x40xf32>
    %22 = tpu.matmul %19, %21, %cst_14 {dimension_numbers = #tpu.dot_dimension_numbers<[1], [0], [0], [1], [0, 0, 1, 1], [], []>} : vector<8x16xbf16>, vector<16x40xbf16>, vector<8x40xf32> -> vector<8x40xf32>
    %23 = vector.broadcast %20 : vector<8x1xf32> to vector<8x40xf32>
    %24 = arith.addf %22, %23 : vector<8x40xf32>
    %cst_15 = arith.constant 0.00999999977 : f32
    %25 = vector.broadcast %cst_15 : f32 to vector<8x40xf32>
    %26 = arith.mulf %25, %24 : vector<8x40xf32>
    %27 = arith.maximumf %24, %26 : vector<8x40xf32>
    %c64 = arith.constant 64 : index
    %c0_16 = arith.constant 0 : index
    %28 = vector.load %arg2[%c64, %c0_16] : memref<80x48xbf16, #tpu.memory_space<vmem>>, vector<4x8xbf16>
    %c56 = arith.constant 56 : index
    %c0_17 = arith.constant 0 : index
    %29 = vector.load %arg3[%c56, %c0_17] : memref<64x1xf32, #tpu.memory_space<vmem>>, vector<4x1xf32>
    %30 = arith.truncf %27 : vector<8x40xf32> to vector<8x40xbf16>
    %cst_18 = arith.constant dense<0.000000e+00> : vector<4x40xf32>
    %31 = tpu.matmul %28, %30, %cst_18 {dimension_numbers = #tpu.dot_dimension_numbers<[1], [0], [0], [1], [0, 0, 1, 1], [], []>} : vector<4x8xbf16>, vector<8x40xbf16>, vector<4x40xf32> -> vector<4x40xf32>
    %32 = vector.broadcast %29 : vector<4x1xf32> to vector<4x40xf32>
    %33 = arith.addf %31, %32 : vector<4x40xf32>
    %c0_19 = arith.constant 0 : index
    %c0_20 = arith.constant 0 : index
    %34 = vector.load %arg4[%c0_19, %c0_20] : memref<4x40xf32, #tpu.memory_space<vmem>>, vector<4x40xf32>
    tpu.vector_store %arg4[%c0_19, %c0_20], %33 {strides = array<i32>} : memref<4x40xf32, #tpu.memory_space<vmem>>, vector<4x40xf32>,
    return
  }
  func.func @transform_0(%arg0: i32) -> (i32, i32) {
    %c0_i32 = arith.constant 0 : i32
    %c0_i32_0 = arith.constant 0 : i32
    return %arg0, %c0_i32 : i32, i32
  }
  func.func @transform_1(%arg0: i32) -> (i32, i32) {
    %c0_i32 = arith.constant 0 : i32
    %c0_i32_0 = arith.constant 0 : i32
    %c0_i32_1 = arith.constant 0 : i32
    return %c0_i32, %c0_i32_0 : i32, i32
  }
  func.func @transform_2(%arg0: i32) -> (i32, i32) {
    %c0_i32 = arith.constant 0 : i32
    %c0_i32_0 = arith.constant 0 : i32
    %c0_i32_1 = arith.constant 0 : i32
    return %c0_i32, %c0_i32_0 : i32, i32
  }
  func.func @transform_3(%arg0: i32) -> (i32, i32) {
    %c0_i32 = arith.constant 0 : i32
    %c0_i32_0 = arith.constant 0 : i32
    return %c0_i32, %arg0 : i32, i32
  }
}

</mosaic_0001>

<llo_original>
// kernel: tpu_custom_call.1
$region0: #{tpu_custom_call.1}
  #allocation0 [shape = 'u32[]', space=smem, size = 0x4, offset = 0x4, fixed_abs, tag = 'smem constant byte address 0x4 - core index']
  #allocation1 [shape = 'u32[144,128]{1,0:T(1,128)}', space=vmem, size = 0x12000, scoped, tag = 'internal scratch']
  %s0 = inlined_call_operand.vmem [shape: f32[40,48], index: 0, kind: input, shape index: {}]
  %s1 = inlined_call_operand.vmem [shape: bf16[80,48], index: 1, kind: input, shape index: {}]
  %s2 = inlined_call_operand.vmem [shape: f32[64,1], index: 2, kind: input, shape index: {}]
  %s3 = inlined_call_operand.hbm [shape: f32[4,40], index: 3, kind: output, shape index: {}]
  %s4 = sld [smem:[#allocation0]]
  $region22: #{tpu_custom_call.1} parent=0
    _
  %s6 = ssub.s32 1, %s4
  %s7 = scalar_select 0, %s6, %s4
  $region1: #{tpu_custom_call.1} parent=0
    #allocation2 [shape = 'u8[2048]{0}', space=vmem, size = 0x800, scoped, tag = 'output window, operand 0, single buffered']
    #allocation3 [shape = 's32[1]{0}', space=sflag, size = 0x4, scoped, tag = 'scoped memory for tpu_custom_call.1']
    %8 = vsyncpa [#allocation3], 0
    // Predicated region
    $region2: #{tpu_custom_call.1} parent=1 // pred_check
      _
    $region3: #{tpu_custom_call.1} parent=1 // pred_check_branch
      %10 = sbr.rel (0) target = $region5
    $region4: #{tpu_custom_call.1} parent=1 // pred_region
      _
    $region5: #{tpu_custom_call.1} parent=1 // pred_fallthru
      _
    // Predicated region
    $region6: #{tpu_custom_call.1} parent=1 // pred_check
      _
    $region7: #{tpu_custom_call.1} parent=1 // pred_check_branch
      %12 = sbr.rel (0) target = $region9
    $region8: #{tpu_custom_call.1} parent=1 // pred_region
      _
    $region9: #{tpu_custom_call.1} parent=1 // pred_fallthru
      _
    // Predicated region
    $region10: #{tpu_custom_call.1} parent=1 // pred_check
      _
    $region11: #{tpu_custom_call.1} parent=1 // pred_check_branch
      %14 = sbr.rel (0) target = $region13
    $region12: #{tpu_custom_call.1} parent=1 // pred_region
      _
    $region13: #{tpu_custom_call.1} parent=1 // pred_fallthru
      _
    %v16 = vld [vmem:[%s0] sm:$0xff]
    %v17 = vld [vmem:[%s0 + $0x8] sm:$0xff]
    %v18 = vld [vmem:[%s0 + $0x10] sm:$0xff]
    %v19 = vld [vmem:[%s0 + $0x18] sm:$0xff]
    %v20 = vld [vmem:[%s0 + $0x20] sm:$0xff]
    %v21 = vpack.c.bf16 %v17, %v16
    %v22 = vpack.c.bf16 %v19, %v18
    %v23 = vpack.c.bf16 %v20, %v20
    %v24 = vld [vmem:[%s1] sm:$0xf]
    %v25 = vld [vmem:[%s1 + $0x4] sm:$0xf]
    %v26 = vld [vmem:[%s1 + $0x8] sm:$0xf]
    %v27 = vld [vmem:[%s1 + $0xc] sm:$0xf]
    %v28 = vld [vmem:[%s2] sm:$0xff]
    %v29 = vld [vmem:[%s2 + $0x8] sm:$0xff]
    %v30 = vld [vmem:[%s2 + $0x10] sm:$0xff]
    %v31 = vld [vmem:[%s2 + $0x18] sm:$0xff]
    %33 = vset.pattern.permute.xlu0 0
    %34 = vperm.xlu0 %33, %v28
    %v35 = vpop.permute.xlu0 %34
    %38 = vset.pattern.permute.xlu0 0
    %39 = vperm.xlu0 %38, %v29
    %v40 = vpop.permute.xlu0 %39
    %43 = vset.pattern.permute.xlu0 0
    %44 = vperm.xlu0 %43, %v30
    %v45 = vpop.permute.xlu0 %44
    %48 = vset.pattern.permute.xlu0 0
    %49 = vperm.xlu0 %48, %v31
    %v50 = vpop.permute.xlu0 %49
    %v56 = vunpack.c.l.b16 %v24
    %v57 = vunpack.c.l.b16 %v25
    %v58 = vunpack.c.l.b16 %v26
    %v59 = vunpack.c.l.b16 %v27
    %v60 = vpack.c.b16 %v57, %v56
    %v61 = vpack.c.b16 %v59, %v58
    %vm62 = vcmask 392192
    %v64 = vsel %vm62, %v60, 0
    %v67 = vsel %vm62, %v61, 0
    %v70 = vsel %vm62, %v21, 0
    %v73 = vsel %vm62, %v22, 0
    %v76 = vsel %vm62, %v23, 0
    %78 = vmatprep.subr.bf16.mxu0 0
    %79 = vmatpush1.bf16.xpose.msra.mxu0 0
    %80 = vmatprep.subr.bf16.mxu0 0
    %81 = vmatpush1.bf16.xpose.msra.mxu0 0
    %82 = vmatprep.subr.bf16.mxu0 0
    %83 = vmatpush1.bf16.xpose.msra.mxu0 0
    %84 = vmatprep.subr.bf16.mxu0 0
    %85 = vmatpush1.bf16.xpose.msra.mxu0 0
    %86 = vmatprep.subr.bf16.mxu0 0
    %87 = vmatpush1.bf16.xpose.msra.mxu0 0
    %88 = vmatprep.subr.bf16.mxu0 0
    %89 = vmatpush1.bf16.xpose.msra.mxu0 %v76
    %90 = vmatprep.subr.bf16.mxu0 0
    %91 = vmatpush1.bf16.xpose.msra.mxu0 %v73
    %92 = vmatprep.subr.bf16.mxu0 0
    %93 = vmatpush1.bf16.xpose.msra.mxu0 %v70
    %94 = vmatprep.subr.bf16.mxu0 0
    %95 = vmatpush2.bf16.xpose.msra.mxu0 0
    %96 = vmatprep.subr.bf16.mxu0 0
    %97 = vmatpush2.bf16.xpose.msra.mxu0 0
    %98 = vmatprep.subr.bf16.mxu0 0
    %99 = vmatpush2.bf16.xpose.msra.mxu0 0
    %100 = vmatprep.subr.bf16.mxu0 0
    %101 = vmatpush2.bf16.xpose.msra.mxu0 0
    %102 = vmatprep.subr.bf16.mxu0 0
    %103 = vmatpush2.bf16.xpose.msra.mxu0 0
    %104 = vmatprep.subr.bf16.mxu0 0
    %105 = vmatpush2.bf16.xpose.msra.mxu0 0
    %106 = vmatprep.subr.bf16.mxu0 0
    %107 = vmatpush2.bf16.xpose.msra.mxu0 0
    %108 = vmatprep.subr.bf16.mxu0 0
    %109 = vmatpush2.bf16.xpose.msra.mxu0 0
    %110 = vmatprep.mubr.bf16.mxu0 0
    %111 = vmatmul.mubr.bf16.gmra.mxu0 %v64
    %v112 = vpop.f32.mrf.mxu0
    %v113 = vadd.f32 %v35, %v112
    %v114 = vpop.f32.mrf.mxu0
    %v115 = vpop.f32.mrf.mxu0
    %v116 = vadd.f32 %v40, %v115
    %v117 = vpop.f32.mrf.mxu0
    %118 = vmatprep.mubr.bf16.mxu0 0
    %119 = vmatmul.mubr.bf16.gmra.mxu0 %v67
    %v120 = vpop.f32.mrf.mxu0
    %v121 = vadd.f32 %v45, %v120
    %v122 = vpop.f32.mrf.mxu0
    %v123 = vpop.f32.mrf.mxu0
    %v124 = vadd.f32 %v50, %v123
    %v125 = vpop.f32.mrf.mxu0
    %126 = vdwg.mxu0
    %v127 = vmul.f32 %v113, 0.01
    %v128 = vmul.f32 %v116, 0.01
    %v129 = vmul.f32 %v121, 0.01
    %v130 = vmul.f32 %v124, 0.01
    %v131 = vmax.f32 %v113, %v127
    %v132 = vmax.f32 %v116, %v128
    %v133 = vmax.f32 %v121, %v129
    %v134 = vmax.f32 %v124, %v130
    %v135 = vld [vmem:[%s1 + $0x10] sm:$0xf]
    %v136 = vld [vmem:[%s1 + $0x14] sm:$0xf]
    %v137 = vld [vmem:[%s2 + $0x20] sm:$0xff]
    %v138 = vld [vmem:[%s2 + $0x28] sm:$0xff]
    %v139 = vpack.c.bf16 %v132, %v131
    %v140 = vpack.c.bf16 %v134, %v133
    %142 = vset.pattern.permute.xlu0 0
    %143 = vperm.xlu0 %142, %v137
    %v144 = vpop.permute.xlu0 %143
    %147 = vset.pattern.permute.xlu0 0
    %148 = vperm.xlu0 %147, %v138
    %v149 = vpop.permute.xlu0 %148
    %v153 = vunpack.c.l.b16 %v135
    %v154 = vunpack.c.l.b16 %v136
    %v155 = vpack.c.b16 %v154, %v153
    %vm156 = vcmask 261120
    %v158 = vsel %vm156, %v155, 0
    %160 = vmatprep.subr.bf16.mxu0 0
    %161 = vmatpush1.bf16.msra.mxu0 0
    %162 = vmatprep.subr.bf16.mxu0 0
    %163 = vmatpush1.bf16.msra.mxu0 0
    %164 = vmatprep.subr.bf16.mxu0 0
    %165 = vmatpush1.bf16.msra.mxu0 0
    %166 = vmatprep.subr.bf16.mxu0 0
    %167 = vmatpush1.bf16.msra.mxu0 0
    %168 = vmatprep.subr.bf16.mxu0 0
    %169 = vmatpush1.bf16.msra.mxu0 0
    %170 = vmatprep.subr.bf16.mxu0 0
    %171 = vmatpush1.bf16.msra.mxu0 0
    %172 = vmatprep.subr.bf16.mxu0 0
    %173 = vmatpush1.bf16.msra.mxu0 %v140
    %174 = vmatprep.subr.bf16.mxu0 0
    %175 = vmatpush1.bf16.msra.mxu0 %v139
    %176 = vmatprep.subr.bf16.mxu0 0
    %177 = vmatpush2.bf16.msra.mxu0 0
    %178 = vmatprep.subr.bf16.mxu0 0
    %179 = vmatpush2.bf16.msra.mxu0 0
    %180 = vmatprep.subr.bf16.mxu0 0
    %181 = vmatpush2.bf16.msra.mxu0 0
    %182 = vmatprep.subr.bf16.mxu0 0
    %183 = vmatpush2.bf16.msra.mxu0 0
    %184 = vmatprep.subr.bf16.mxu0 0
    %185 = vmatpush2.bf16.msra.mxu0 0
    %186 = vmatprep.subr.bf16.mxu0 0
    %187 = vmatpush2.bf16.msra.mxu0 0
    %188 = vmatprep.subr.bf16.mxu0 0
    %189 = vmatpush2.bf16.msra.mxu0 0
    %190 = vmatprep.subr.bf16.mxu0 0
    %191 = vmatpush2.bf16.msra.mxu0 0
    %192 = vmatprep.mubr.bf16.mxu0 0
    %193 = vmatmul.mubr.bf16.gmra.mxu0 %v158
    %v194 = vpop.f32.mrf.mxu0
    %v195 = vadd.f32 %v144, %v194
    %v196 = vpop.f32.mrf.mxu0
    %v197 = vpop.f32.mrf.mxu0
    %v198 = vadd.f32 %v149, %v197
    %v199 = vpop.f32.mrf.mxu0
    %200 = vdwg.mxu0
    %v201 = vmul.f32 %v195, 0.01
    %v202 = vmul.f32 %v198, 0.01
    %v203 = vmax.f32 %v195, %v201
    %v204 = vmax.f32 %v198, %v202
    %v205 = vld [vmem:[%s1 + $0x18] sm:$0xf]
    %v206 = vld [vmem:[%s2 + $0x30] sm:$0xff]
    %v207 = vpack.c.bf16 %v204, %v203
    %209 = vset.pattern.permute.xlu0 0
    %210 = vperm.xlu0 %209, %v206
    %v211 = vpop.permute.xlu0 %210
    %vm213 = vcmask 130048
    %v215 = vsel %vm213, %v205, 0
    %217 = vmatprep.subr.bf16.mxu0 0
    %218 = vmatpush1.bf16.msra.mxu0 0
    %219 = vmatprep.subr.bf16.mxu0 0
    %220 = vmatpush1.bf16.msra.mxu0 0
    %221 = vmatprep.subr.bf16.mxu0 0
    %222 = vmatpush1.bf16.msra.mxu0 0
    %223 = vmatprep.subr.bf16.mxu0 0
    %224 = vmatpush1.bf16.msra.mxu0 0
    %225 = vmatprep.subr.bf16.mxu0 0
    %226 = vmatpush1.bf16.msra.mxu0 0
    %227 = vmatprep.subr.bf16.mxu0 0
    %228 = vmatpush1.bf16.msra.mxu0 0
    %229 = vmatprep.subr.bf16.mxu0 0
    %230 = vmatpush1.bf16.msra.mxu0 0
    %231 = vmatprep.subr.bf16.mxu0 0
    %232 = vmatpush1.bf16.msra.mxu0 %v207
    %233 = vmatprep.subr.bf16.mxu0 0
    %234 = vmatpush2.bf16.msra.mxu0 0
    %235 = vmatprep.subr.bf16.mxu0 0
    %236 = vmatpush2.bf16.msra.mxu0 0
    %237 = vmatprep.subr.bf16.mxu0 0
    %238 = vmatpush2.bf16.msra.mxu0 0
    %239 = vmatprep.subr.bf16.mxu0 0
    %240 = vmatpush2.bf16.msra.mxu0 0
    %241 = vmatprep.subr.bf16.mxu0 0
    %242 = vmatpush2.bf16.msra.mxu0 0
    %243 = vmatprep.subr.bf16.mxu0 0
    %244 = vmatpush2.bf16.msra.mxu0 0
    %245 = vmatprep.subr.bf16.mxu0 0
    %246 = vmatpush2.bf16.msra.mxu0 0
    %247 = vmatprep.subr.bf16.mxu0 0
    %248 = vmatpush2.bf16.msra.mxu0 0
    %249 = vmatprep.mubr.bf16.mxu0 0
    %250 = vmatmul.mubr.bf16.gmra.mxu0 %v215
    %v251 = vpop.f32.mrf.mxu0
    %v252 = vadd.f32 %v211, %v251
    %v253 = vpop.f32.mrf.mxu0
    %v254 = vpop.f32.mrf.mxu0
    %v255 = vpop.f32.mrf.mxu0
    %256 = vdwg.mxu0
    %v257 = vmul.f32 %v252, 0.01
    %v258 = vmax.f32 %v252, %v257
    %v259 = vld [vmem:[%s1 + $0x20] sm:$0x3]
    %v260 = vld [vmem:[%s2 + $0x38] sm:$0xf]
    %v261 = vpack.c.bf16 %v258, %v258
    %263 = vset.pattern.permute.xlu0 0
    %264 = vperm.xlu0 %263, %v260
    %v265 = vpop.permute.xlu0 %264
    %vm267 = vcmask 64512
    %v269 = vsel %vm267, %v259, 0
    %vm271 = vcmask 1043456
    %v273 = vsel %vm271, %v261, 0
    %275 = vmatprep.subr.bf16.mxu0 0
    %276 = vmatpush1.bf16.msra.mxu0 0
    %277 = vmatprep.subr.bf16.mxu0 0
    %278 = vmatpush1.bf16.msra.mxu0 0
    %279 = vmatprep.subr.bf16.mxu0 0
    %280 = vmatpush1.bf16.msra.mxu0 0
    %281 = vmatprep.subr.bf16.mxu0 0
    %282 = vmatpush1.bf16.msra.mxu0 0
    %283 = vmatprep.subr.bf16.mxu0 0
    %284 = vmatpush1.bf16.msra.mxu0 0
    %285 = vmatprep.subr.bf16.mxu0 0
    %286 = vmatpush1.bf16.msra.mxu0 0
    %287 = vmatprep.subr.bf16.mxu0 0
    %288 = vmatpush1.bf16.msra.mxu0 0
    %289 = vmatprep.subr.bf16.mxu0 0
    %290 = vmatpush1.bf16.msra.mxu0 %v273
    %291 = vmatprep.subr.bf16.mxu0 0
    %292 = vmatpush2.bf16.msra.mxu0 0
    %293 = vmatprep.subr.bf16.mxu0 0
    %294 = vmatpush2.bf16.msra.mxu0 0
    %295 = vmatprep.subr.bf16.mxu0 0
    %296 = vmatpush2.bf16.msra.mxu0 0
    %297 = vmatprep.subr.bf16.mxu0 0
    %298 = vmatpush2.bf16.msra.mxu0 0
    %299 = vmatprep.subr.bf16.mxu0 0
    %300 = vmatpush2.bf16.msra.mxu0 0
    %301 = vmatprep.subr.bf16.mxu0 0
    %302 = vmatpush2.bf16.msra.mxu0 0
    %303 = vmatprep.subr.bf16.mxu0 0
    %304 = vmatpush2.bf16.msra.mxu0 0
    %305 = vmatprep.subr.bf16.mxu0 0
    %306 = vmatpush2.bf16.msra.mxu0 0
    %307 = vmatprep.mubr.bf16.mxu0 0
    %308 = vmatmul.mubr.bf16.gmra.mxu0 %v269
    %v309 = vpop.f32.mrf.mxu0
    %v310 = vadd.f32 %v265, %v309
    %v311 = vpop.f32.mrf.mxu0
    %v312 = vpop.f32.mrf.mxu0
    %v313 = vpop.f32.mrf.mxu0
    %314 = vdwg.mxu0
    %vm315 = vcmask 322560
    %316 = vst.msk [vmem:[#allocation2] sm:$0xf] %vm315, %v310
    // Predicated region
    $region14: #{tpu_custom_call.1} parent=1 // pred_check
      _
    $region15: #{tpu_custom_call.1} parent=1 // pred_check_branch
      %318 = sbr.rel (0) target = $region17
    $region16: #{tpu_custom_call.1} parent=1 // pred_region
      %s320 = ssub.s32 64, 64
      %321 = vsyncadd [#allocation3], %s320
      %s323 = sshll.u32 [#allocation2], 4
      %s324 = int_to_ptr.vmem [resolvable:$true] %s323
      %326 = dma.vmem_to_hbm [thread:$0]  %s324, 64, %s3, [#allocation3]
    $region17: #{tpu_custom_call.1} parent=1 // pred_fallthru
      _
    // Predicated region
    $region18: #{tpu_custom_call.1} parent=1 // pred_check
      _
    $region19: #{tpu_custom_call.1} parent=1 // pred_check_branch
      %328 = sbr.rel (0) target = $region21
    $region20: #{tpu_custom_call.1} parent=1 // pred_region
      %329 = dma.done [#allocation3], 64
    $region21: #{tpu_custom_call.1} parent=1 // pred_fallthru
      _
    %330 = vsyncpa [#allocation3], 1

</llo_original>
